<compile_context>
chip_gen: v7x
topology: tpu7x:2x2x1
jax: 0.10.0
libtpu: 0.0.40
codegen_flags: <defaults>
</compile_context>

<pallas_src>
import math

import jax
import jax.numpy as jnp
from jax.experimental import pallas as pl
from jax.experimental.pallas import tpu as pltpu


def _self_attention_kernel(x_ref, w_ref, b_ref, out_ref, attn_ref):
    x = x_ref[...]                                     # (Bb, T, F) float32
    bb, t, f = x.shape
    xb = x.reshape(bb * t, f).astype(jnp.bfloat16)     # bf16 MXU operand

    # Three lane-aligned projections. Weights are already bf16 and the
    # 1/sqrt(F) scale is folded into the query weight/bias in the wrapper.
    def proj(i):
        y = jnp.dot(xb, w_ref[i], preferred_element_type=jnp.float32)  # (Bb*T, F) f32
        return (y + b_ref[i]).reshape(bb, t, f)

    q = proj(0)
    k = proj(1)
    v = proj(2)

    # scores = (x Wq^T / sqrt(F)) @ (x Wk^T)^T as a batched MXU contraction.
    scores = jnp.einsum(
        "btf,bsf->bts",
        q.astype(jnp.bfloat16), k.astype(jnp.bfloat16),
        preferred_element_type=jnp.float32)            # (Bb, T, T) f32

    # Numerically stable softmax over the last axis, kept in f32.
    m = jnp.max(scores, axis=-1, keepdims=True)
    p = jnp.exp(scores - m)
    denom = jnp.sum(p, axis=-1, keepdims=True)
    attn = p * pl.reciprocal(denom)                    # exact: rows sum to 1

    out = jnp.einsum(
        "bts,bsf->btf",
        attn.astype(jnp.bfloat16), v.astype(jnp.bfloat16),
        preferred_element_type=jnp.float32)            # (Bb, T, F) f32

    out_ref[...] = out.astype(out_ref.dtype)
    attn_ref[...] = attn.astype(attn_ref.dtype)


def _physical_vmem_bytes():
    """Per-core VMEM capacity; conservative fallback if the query is unavailable."""
    try:
        return int(pltpu.get_tpu_info().vmem_capacity_bytes)
    except Exception:
        pass
    try:
        kind = jax.devices()[0].device_kind.lower()
        if "v7" in kind:
            return 64 << 20
        return 128 << 20
    except Exception:
        return 64 << 20  # smallest across supported generations (v7x)


def _block_vmem_bytes(bb, T, F):
    """Honest per-grid-step VMEM estimate for a batch block of `bb` sequences."""
    f32, bf16 = 4, 2
    Tp = ((T + 7) // 8) * 8            # sublane padding of the 2nd-to-last dim
    Fp = ((F + 127) // 128) * 128      # lane padding of the last dim
    Tl = ((T + 127) // 128) * 128      # T when it sits on the lane axis (scores)

    x_blk = bb * Tp * Fp * f32
    out_blk = bb * Tp * Fp * f32
    attn_blk = bb * Tp * Tl * f32
    io = 2 * (x_blk + out_blk + attn_blk)                  # double-buffered I/O blocks
    w = 2 * (3 * Fp * Fp * bf16 + 3 * 8 * Fp * f32)        # weights (bf16) + bias, 2x buffered
    inter = bb * Tp * Fp * (4 * f32 + 4 * bf16)            # q/k/v/out f32 + bf16 copies
    inter += bb * Tp * Tl * (3 * f32 + bf16)               # scores, p, attn + bf16 p
    return io + w + inter


def _pick_batch_block(B, T, F, budget_bytes, min_grid=2):
    """Largest divisor of B whose per-step working set fits, keeping grid >= min_grid."""
    best = 1
    for d in range(2, B + 1):
        if B % d:
            continue
        if B // d < min_grid:
            continue
        if _block_vmem_bytes(d, T, F) <= budget_bytes:
            best = d
    return best


def self_attention(x, wk, bk, wq, bq, wv, bv):
    """x: [B, T, F] float32. Weights: [F, F] in PyTorch (out, in) layout. Biases: [F]."""
    B, T, F = x.shape
    scale = 1.0 / math.sqrt(float(F))

    # Wrapper-side layout plumbing (free): transpose to (in, out), fold the
    # 1/sqrt(F) scale into the query projection, stack q/k/v along a leading
    # axis (so the kernel split is lane-aligned), and pre-cast weights to bf16.
    w_qkv = jnp.stack([wq.T * scale, wk.T, wv.T], axis=0).astype(jnp.bfloat16)  # (3, F, F)
    b_qkv = jnp.stack([bq * scale, bk, bv], axis=0).reshape(3, 1, F)            # (3, 1, F) f32

    vmem_cap = _physical_vmem_bytes()
    vmem_limit = int(min(vmem_cap * 3 // 4, 96 << 20))   # v6e ~96 MiB, v7x ~48 MiB
    budget = vmem_limit // 2                              # headroom for compiler temps
    Bb = _pick_batch_block(B, T, F, budget, min_grid=2)
    grid = (B // Bb,)

    out, attn = pl.pallas_call(
        _self_attention_kernel,
        out_shape=(
            jax.ShapeDtypeStruct((B, T, F), x.dtype),
            jax.ShapeDtypeStruct((B, T, T), x.dtype),
        ),
        grid_spec=pltpu.PrefetchScalarGridSpec(
            num_scalar_prefetch=0,
            grid=grid,
            in_specs=[
                pl.BlockSpec((Bb, T, F), lambda g: (g, 0, 0)),   # x
                pl.BlockSpec((3, F, F), lambda g: (0, 0, 0)),    # stacked W (in,out), bf16
                pl.BlockSpec((3, 1, F), lambda g: (0, 0, 0)),    # stacked bias, f32
            ],
            out_specs=[
                pl.BlockSpec((Bb, T, F), lambda g: (g, 0, 0)),   # output
                pl.BlockSpec((Bb, T, T), lambda g: (g, 0, 0)),   # attention weights
            ],
        ),
        compiler_params=pltpu.CompilerParams(
            dimension_semantics=("parallel",),
            vmem_limit_bytes=vmem_limit),
    )(x, w_qkv, b_qkv)
    return out, attn


def _reference(x, wk, bk, wq, bq, wv, bv):
    keys = x @ wk.T + bk
    queries = x @ wq.T + bq
    values = x @ wv.T + bv
    scores = jnp.einsum("btf,bsf->bts", queries, keys) / math.sqrt(x.shape[-1])
    attn = jax.nn.softmax(scores, axis=-1)
    out = jnp.einsum("bts,bsf->btf", attn, values)
    return out, attn


if __name__ == "__main__":
    B, T, F = 2, 8, 32
    key = jax.random.PRNGKey(0)
    kx, kwk, kbk, kwq, kbq, kwv, kbv = jax.random.split(key, 7)

    x = jax.random.normal(kx, (B, T, F), dtype=jnp.float32)
    # Deterministic parameter init (uniform like PyTorch Linear default scale).
    bound = 1.0 / math.sqrt(F)
    wk = jax.random.uniform(kwk, (F, F), jnp.float32, -bound, bound)
    bk = jax.random.uniform(kbk, (F,), jnp.float32, -bound, bound)
    wq = jax.random.uniform(kwq, (F, F), jnp.float32, -bound, bound)
    bq = jax.random.uniform(kbq, (F,), jnp.float32, -bound, bound)
    wv = jax.random.uniform(kwv, (F, F), jnp.float32, -bound, bound)
    bv = jax.random.uniform(kbv, (F,), jnp.float32, -bound, bound)

    out, attn = self_attention(x, wk, bk, wq, bq, wv, bv)
    jax.block_until_ready((out, attn))

    ref_out, ref_attn = _reference(x, wk, bk, wq, bq, wv, bv)
    # Tolerances account for bf16 MXU operands (f32 accumulation).
    assert jnp.allclose(out, ref_out, atol=3e-2, rtol=3e-2), "output mismatch"
    assert jnp.allclose(attn, ref_attn, atol=3e-2, rtol=3e-2), "attention mismatch"

    print("KERNEL_OK")
</pallas_src>

<mosaic_0001>
module attributes {stable_mosaic.version = 11 : i64} {
  func.func @_self_attention_kernel(%arg0: i32, %arg1: memref<1x8x32xf32, #tpu.memory_space<vmem>>, %arg2: memref<3x32x32xbf16, #tpu.memory_space<vmem>>, %arg3: memref<3x1x32xf32, #tpu.memory_space<vmem>>, %arg4: memref<1x8x32xf32, #tpu.memory_space<vmem>>, %arg5: memref<1x8x8xf32, #tpu.memory_space<vmem>>) attributes {dimension_semantics = [#tpu.dimension_semantics<parallel>], iteration_bounds = array<i64: 2>, scalar_prefetch = 0 : i64, scratch_operands = 0 : i64, tpu.core_type = #tpu.core_type<tc>, window_params = [{transform_indices = @transform_0, window_bounds = array<i64: 1, 8, 32>}, {pipeline_mode = #tpu.pipeline_mode<synchronous>, transform_indices = @transform_1, window_bounds = array<i64: 3, 32, 32>}, {pipeline_mode = #tpu.pipeline_mode<synchronous>, transform_indices = @transform_2, window_bounds = array<i64: 3, 1, 32>}, {transform_indices = @transform_3, window_bounds = array<i64: 1, 8, 32>}, {transform_indices = @transform_4, window_bounds = array<i64: 1, 8, 8>}]} {
    %c0 = arith.constant 0 : index
    %c0_0 = arith.constant 0 : index
    %c0_1 = arith.constant 0 : index
    %0 = vector.load %arg1[%c0, %c0_0, %c0_1] : memref<1x8x32xf32, #tpu.memory_space<vmem>>, vector<1x8x32xf32>
    %1 = vector.shape_cast %0 : vector<1x8x32xf32> to vector<8x32xf32>
    %2 = arith.truncf %1 : vector<8x32xf32> to vector<8x32xbf16>
    %c0_2 = arith.constant 0 : index
    %c0_3 = arith.constant 0 : index
    %c0_4 = arith.constant 0 : index
    %3 = vector.load %arg2[%c0_2, %c0_3, %c0_4] : memref<3x32x32xbf16, #tpu.memory_space<vmem>>, vector<1x32x32xbf16>
    %4 = vector.shape_cast %3 : vector<1x32x32xbf16> to vector<32x32xbf16>
    %cst = arith.constant dense<0.000000e+00> : vector<8x32xf32>
    %5 = tpu.matmul %2, %4, %cst {dimension_numbers = #tpu.dot_dimension_numbers<[1], [0], [0], [1], [0, 0, 1, 1], [], []>} : vector<8x32xbf16>, vector<32x32xbf16>, vector<8x32xf32> -> vector<8x32xf32>
    %c0_5 = arith.constant 0 : index
    %c0_6 = arith.constant 0 : index
    %c0_7 = arith.constant 0 : index
    %6 = vector.load %arg3[%c0_5, %c0_6, %c0_7] : memref<3x1x32xf32, #tpu.memory_space<vmem>>, vector<1x1x32xf32>
    %7 = vector.shape_cast %6 : vector<1x1x32xf32> to vector<1x32xf32>
    %8 = vector.broadcast %7 : vector<1x32xf32> to vector<8x32xf32>
    %9 = arith.addf %5, %8 : vector<8x32xf32>
    %10 = vector.shape_cast %9 : vector<8x32xf32> to vector<1x8x32xf32>
    %c1 = arith.constant 1 : index
    %c0_8 = arith.constant 0 : index
    %c0_9 = arith.constant 0 : index
    %11 = vector.load %arg2[%c1, %c0_8, %c0_9] : memref<3x32x32xbf16, #tpu.memory_space<vmem>>, vector<1x32x32xbf16>
    %12 = vector.shape_cast %11 : vector<1x32x32xbf16> to vector<32x32xbf16>
    %cst_10 = arith.constant dense<0.000000e+00> : vector<8x32xf32>
    %13 = tpu.matmul %2, %12, %cst_10 {dimension_numbers = #tpu.dot_dimension_numbers<[1], [0], [0], [1], [0, 0, 1, 1], [], []>} : vector<8x32xbf16>, vector<32x32xbf16>, vector<8x32xf32> -> vector<8x32xf32>
    %c1_11 = arith.constant 1 : index
    %c0_12 = arith.constant 0 : index
    %c0_13 = arith.constant 0 : index
    %14 = vector.load %arg3[%c1_11, %c0_12, %c0_13] : memref<3x1x32xf32, #tpu.memory_space<vmem>>, vector<1x1x32xf32>
    %15 = vector.shape_cast %14 : vector<1x1x32xf32> to vector<1x32xf32>
    %16 = vector.broadcast %15 : vector<1x32xf32> to vector<8x32xf32>
    %17 = arith.addf %13, %16 : vector<8x32xf32>
    %18 = vector.shape_cast %17 : vector<8x32xf32> to vector<1x8x32xf32>
    %c2 = arith.constant 2 : index
    %c0_14 = arith.constant 0 : index
    %c0_15 = arith.constant 0 : index
    %19 = vector.load %arg2[%c2, %c0_14, %c0_15] : memref<3x32x32xbf16, #tpu.memory_space<vmem>>, vector<1x32x32xbf16>
    %20 = vector.shape_cast %19 : vector<1x32x32xbf16> to vector<32x32xbf16>
    %cst_16 = arith.constant dense<0.000000e+00> : vector<8x32xf32>
    %21 = tpu.matmul %2, %20, %cst_16 {dimension_numbers = #tpu.dot_dimension_numbers<[1], [0], [0], [1], [0, 0, 1, 1], [], []>} : vector<8x32xbf16>, vector<32x32xbf16>, vector<8x32xf32> -> vector<8x32xf32>
    %c2_17 = arith.constant 2 : index
    %c0_18 = arith.constant 0 : index
    %c0_19 = arith.constant 0 : index
    %22 = vector.load %arg3[%c2_17, %c0_18, %c0_19] : memref<3x1x32xf32, #tpu.memory_space<vmem>>, vector<1x1x32xf32>
    %23 = vector.shape_cast %22 : vector<1x1x32xf32> to vector<1x32xf32>
    %24 = vector.broadcast %23 : vector<1x32xf32> to vector<8x32xf32>
    %25 = arith.addf %21, %24 : vector<8x32xf32>
    %26 = vector.shape_cast %25 : vector<8x32xf32> to vector<1x8x32xf32>
    %27 = arith.truncf %10 : vector<1x8x32xf32> to vector<1x8x32xbf16>
    %28 = arith.truncf %18 : vector<1x8x32xf32> to vector<1x8x32xbf16>
    "tpu.trace_start"() <{level = 10 : i32, message = "btf,bsf->bts"}> : () -> ()
    %cst_20 = arith.constant dense<0.000000e+00> : vector<1x8x8xf32>
    %29 = tpu.matmul %27, %28, %cst_20 {dimension_numbers = #tpu.dot_dimension_numbers<[2], [2], [1], [1], [0, 0, 0, 1, 1, 1], [0], [0]>} : vector<1x8x32xbf16>, vector<1x8x32xbf16>, vector<1x8x8xf32> -> vector<1x8x8xf32>
    "tpu.trace_stop"() : () -> ()
    %cst_21 = arith.constant dense<0xFF800000> : vector<1x8xf32>
    %30 = vector.multi_reduction <maximumf>, %29, %cst_21 [2] : vector<1x8x8xf32> to vector<1x8xf32>
    %31 = vector.shape_cast %30 : vector<1x8xf32> to vector<1x8x1xf32>
    %32 = vector.broadcast %31 : vector<1x8x1xf32> to vector<1x8x8xf32>
    %33 = arith.subf %29, %32 : vector<1x8x8xf32>
    %34 = math.exp %33 : vector<1x8x8xf32>
    %cst_22 = arith.constant dense<0.000000e+00> : vector<1x8xf32>
    %35 = vector.multi_reduction <add>, %34, %cst_22 [2] : vector<1x8x8xf32> to vector<1x8xf32>
    %36 = vector.shape_cast %35 : vector<1x8xf32> to vector<1x8x1xf32>
    %37 = tpu.reciprocal %36 : vector<1x8x1xf32> -> vector<1x8x1xf32>
    %38 = vector.broadcast %37 : vector<1x8x1xf32> to vector<1x8x8xf32>
    %39 = arith.mulf %34, %38 : vector<1x8x8xf32>
    %40 = arith.truncf %39 : vector<1x8x8xf32> to vector<1x8x8xbf16>
    %41 = arith.truncf %26 : vector<1x8x32xf32> to vector<1x8x32xbf16>
    "tpu.trace_start"() <{level = 10 : i32, message = "bts,bsf->btf"}> : () -> ()
    %cst_23 = arith.constant dense<0.000000e+00> : vector<1x8x32xf32>
    %42 = tpu.matmul %40, %41, %cst_23 {dimension_numbers = #tpu.dot_dimension_numbers<[2], [1], [1], [2], [0, 0, 0, 1, 1, 2], [0], [0]>} : vector<1x8x8xbf16>, vector<1x8x32xbf16>, vector<1x8x32xf32> -> vector<1x8x32xf32>
    "tpu.trace_stop"() : () -> ()
    %c0_24 = arith.constant 0 : index
    %c0_25 = arith.constant 0 : index
    %c0_26 = arith.constant 0 : index
    %43 = vector.load %arg4[%c0_24, %c0_25, %c0_26] : memref<1x8x32xf32, #tpu.memory_space<vmem>>, vector<1x8x32xf32>
    tpu.vector_store %arg4[%c0_24, %c0_25, %c0_26], %42 {strides = array<i32>} : memref<1x8x32xf32, #tpu.memory_space<vmem>>, vector<1x8x32xf32>,
    %c0_27 = arith.constant 0 : index
    %c0_28 = arith.constant 0 : index
    %c0_29 = arith.constant 0 : index
    %44 = vector.load %arg5[%c0_27, %c0_28, %c0_29] : memref<1x8x8xf32, #tpu.memory_space<vmem>>, vector<1x8x8xf32>
    tpu.vector_store %arg5[%c0_27, %c0_28, %c0_29], %39 {strides = array<i32>} : memref<1x8x8xf32, #tpu.memory_space<vmem>>, vector<1x8x8xf32>,
    return
  }
  func.func @transform_0(%arg0: i32) -> (i32, i32, i32) {
    %c0_i32 = arith.constant 0 : i32
    %c0_i32_0 = arith.constant 0 : i32
    %c0_i32_1 = arith.constant 0 : i32
    return %arg0, %c0_i32, %c0_i32_0 : i32, i32, i32
  }
  func.func @transform_1(%arg0: i32) -> (i32, i32, i32) {
    %c0_i32 = arith.constant 0 : i32
    %c0_i32_0 = arith.constant 0 : i32
    %c0_i32_1 = arith.constant 0 : i32
    %c0_i32_2 = arith.constant 0 : i32
    return %c0_i32, %c0_i32_0, %c0_i32_1 : i32, i32, i32
  }
  func.func @transform_2(%arg0: i32) -> (i32, i32, i32) {
    %c0_i32 = arith.constant 0 : i32
    %c0_i32_0 = arith.constant 0 : i32
    %c0_i32_1 = arith.constant 0 : i32
    %c0_i32_2 = arith.constant 0 : i32
    return %c0_i32, %c0_i32_0, %c0_i32_1 : i32, i32, i32
  }
  func.func @transform_3(%arg0: i32) -> (i32, i32, i32) {
    %c0_i32 = arith.constant 0 : i32
    %c0_i32_0 = arith.constant 0 : i32
    %c0_i32_1 = arith.constant 0 : i32
    return %arg0, %c0_i32, %c0_i32_0 : i32, i32, i32
  }
  func.func @transform_4(%arg0: i32) -> (i32, i32, i32) {
    %c0_i32 = arith.constant 0 : i32
    %c0_i32_0 = arith.constant 0 : i32
    %c0_i32_1 = arith.constant 0 : i32
    return %arg0, %c0_i32, %c0_i32_0 : i32, i32, i32
  }
}

</mosaic_0001>

<llo_original>
// kernel: tpu_custom_call.1
$region0: #{tpu_custom_call.1}
  #allocation0 [shape = 'u32[]', space=smem, size = 0x4, offset = 0x4, fixed_abs, tag = 'smem constant byte address 0x4 - core index']
  #allocation1 [shape = 'u32[144,128]{1,0:T(1,128)}', space=vmem, size = 0x12000, scoped, tag = 'internal scratch']
  %s0 = inlined_call_operand.hbm [shape: f32[2,8,32], index: 0, kind: input, shape index: {}]
  %s1 = inlined_call_operand.hbm [shape: bf16[3,32,32], index: 1, kind: input, shape index: {}]
  %s2 = inlined_call_operand.hbm [shape: f32[3,1,32], index: 2, kind: input, shape index: {}]
  %s3 = inlined_call_operand.hbm [shape: f32[2,8,32], index: 3, kind: output, shape index: {0}]
  %s4 = inlined_call_operand.hbm [shape: f32[2,8,8], index: 4, kind: output, shape index: {1}]
  %5 = xla_tuple %s3, %s4
  %s6 = sld [smem:[#allocation0]]
  $region65: #{tpu_custom_call.1} parent=0
    _
  %s8 = ssub.s32 1, %s6
  %s9 = scalar_select 0, %s8, %s6
  $region1: #{tpu_custom_call.1} parent=0
    #allocation2 [shape = 'u8[8192]{0}', space=vmem, size = 0x2000, scoped, tag = 'input window, operand 0']
    #allocation3 [shape = 's32[2]{0}', space=sflag, size = 0x8, scoped, tag = 'scoped memory for tpu_custom_call.1']
    #allocation4 [shape = 's32[2]{0}', space=sflag, size = 0x8, scoped, tag = 'scoped memory for tpu_custom_call.1']
    #allocation5 [shape = 'u8[24576]{0}', space=vmem, size = 0x6000, scoped, tag = 'input window, operand 1, single buffered']
    #allocation6 [shape = 's32[1]{0}', space=sflag, size = 0x4, scoped, tag = 'scoped memory for tpu_custom_call.1']
    #allocation7 [shape = 'u8[1536]{0}', space=vmem, size = 0x800, scoped, tag = 'input window, operand 2, single buffered']
    #allocation8 [shape = 'u8[8192]{0}', space=vmem, size = 0x2000, scoped, tag = 'output window, operand 0']
    #allocation9 [shape = 'u8[8192]{0}', space=vmem, size = 0x2000, scoped, tag = 'output window, operand 1']
    #allocation10 [shape = 's32[2]{0}', space=sflag, size = 0x8, scoped, tag = 'scoped memory for tpu_custom_call.1']
    %10 = vsyncpa [#allocation3], 0
    %s11 = scalar_lea.sflag [#allocation3], 1
    %12 = vsyncpa %s11, 0
    %13 = vsyncpa [#allocation6], 0
    %14 = vsyncpa [#allocation4], 0
    %s15 = scalar_lea.sflag [#allocation4], 1
    %16 = vsyncpa %s15, 0
    %17 = vsyncpa [#allocation10], 0
    %s18 = scalar_lea.sflag [#allocation10], 1
    %19 = vsyncpa %s18, 0
    loop: start=0, step=1, limit=4
    $region2: #{tpu_custom_call.1} parent=1 // loop_pre_header
      _
    $region3: #{tpu_custom_call.1} parent=1 // loop_header
      %s21 = sphi 0, %s25
      %p22 = scmp.ge.s32.totalorder %s21, 4
      %s31 = sphi 0, %s33
      %s34 = sphi 0, %s31
      %s35 = sphi 0, %s34
      %s51 = sphi 0, %s35
      %s55 = sphi 0, %s55
      %s57 = sphi 0, %s55
      %s58 = sphi 0, %s57
      %s72 = sphi 0, %s58
      %s76 = sphi 0, %s76
      %s78 = sphi 0, %s76
      %s79 = sphi 0, %s78
      %s93 = sphi 0, %s79
      %s99 = sphi 0, %s101
      %s102 = sphi 0, %s99
      %s103 = sphi 0, %s102
      %s119 = sphi 0, %s103
      %s125 = sphi 0, %s127
      %s128 = sphi 0, %s125
      %s129 = sphi 0, %s128
      %s145 = sphi 0, %s129
    $region4: #{tpu_custom_call.1} parent=1 // loop_header_branch
      %24 = sbr.rel (%p22) target = $region8
    $region5: #{tpu_custom_call.1} parent=1 // loop_body
      %s26 = ssub.s32 %s21, 1
      %s27 = ssub.s32 %s21, 2
      %s28 = sadd.s32 %s21, 1
      %s29 = ssub.s32 %s21, %s28
      %p30 = scmp.eq.s32.totalorder %s29, 0
      %s32 = sadd.s32 %s31, 1
      %s33 = scalar_select %p30, %s31, %s32
      %p36 = pneg %p30
      %p37 = scmp.eq.s32.totalorder %s21, 1
      %p38 = por %p36, %p37
      %p39 = scmp.ne.s32.totalorder %s31, %s34
      %p40 = scmp.eq.s32.totalorder %s21, 0
      %p41 = por %p39, %p40
      %p42 = scmp.ne.s32.totalorder %s31, %s34
      %p43 = scmp.eq.s32.totalorder %s26, 1
      %p44 = por %p42, %p43
      %p45 = scmp.ne.s32.totalorder %s34, %s35
      %p46 = scmp.eq.s32.totalorder %s26, 0
      %p47 = por %p45, %p46
      %p48 = scmp.ne.s32.totalorder %s34, %s35
      %p49 = scmp.eq.s32.totalorder %s27, 1
      %p50 = por %p48, %p49
      %p52 = scmp.ne.s32.totalorder %s35, %s51
      %p53 = scmp.eq.s32.totalorder %s27, 0
      %p54 = por %p52, %p53
      %s56 = sadd.s32 %s55, 1
      %p59 = scmp.eq.s32.totalorder %s21, 1
      %p60 = scmp.ne.s32.totalorder %s55, %s57
      %p61 = scmp.eq.s32.totalorder %s21, 0
      %p62 = por %p60, %p61
      %p63 = scmp.ne.s32.totalorder %s55, %s57
      %p64 = scmp.eq.s32.totalorder %s26, 1
      %p65 = por %p63, %p64
      %p66 = scmp.ne.s32.totalorder %s57, %s58
      %p67 = scmp.eq.s32.totalorder %s26, 0
      %p68 = por %p66, %p67
      %p69 = scmp.ne.s32.totalorder %s57, %s58
      %p70 = scmp.eq.s32.totalorder %s27, 1
      %p71 = por %p69, %p70
      %p73 = scmp.ne.s32.totalorder %s58, %s72
      %p74 = scmp.eq.s32.totalorder %s27, 0
      %p75 = por %p73, %p74
      %s77 = sadd.s32 %s76, 1
      %p80 = scmp.eq.s32.totalorder %s21, 1
      %p81 = scmp.ne.s32.totalorder %s76, %s78
      %p82 = scmp.eq.s32.totalorder %s21, 0
      %p83 = por %p81, %p82
      %p84 = scmp.ne.s32.totalorder %s76, %s78
      %p85 = scmp.eq.s32.totalorder %s26, 1
      %p86 = por %p84, %p85
      %p87 = scmp.ne.s32.totalorder %s78, %s79
      %p88 = scmp.eq.s32.totalorder %s26, 0
      %p89 = por %p87, %p88
      %p90 = scmp.ne.s32.totalorder %s78, %s79
      %p91 = scmp.eq.s32.totalorder %s27, 1
      %p92 = por %p90, %p91
      %p94 = scmp.ne.s32.totalorder %s79, %s93
      %p95 = scmp.eq.s32.totalorder %s27, 0
      %p96 = por %p94, %p95
      %s97 = ssub.s32 %s21, %s28
      %p98 = scmp.eq.s32.totalorder %s97, 0
      %s100 = sadd.s32 %s99, 1
      %s101 = scalar_select %p98, %s99, %s100
      %p104 = pneg %p98
      %p105 = scmp.eq.s32.totalorder %s21, 1
      %p106 = por %p104, %p105
      %p107 = scmp.ne.s32.totalorder %s99, %s102
      %p108 = scmp.eq.s32.totalorder %s21, 0
      %p109 = por %p107, %p108
      %p110 = scmp.ne.s32.totalorder %s99, %s102
      %p111 = scmp.eq.s32.totalorder %s26, 1
      %p112 = por %p110, %p111
      %p113 = scmp.ne.s32.totalorder %s102, %s103
      %p114 = scmp.eq.s32.totalorder %s26, 0
      %p115 = por %p113, %p114
      %p116 = scmp.ne.s32.totalorder %s102, %s103
      %p117 = scmp.eq.s32.totalorder %s27, 1
      %p118 = por %p116, %p117
      %p120 = scmp.ne.s32.totalorder %s103, %s119
      %p121 = scmp.eq.s32.totalorder %s27, 0
      %p122 = por %p120, %p121
      %s123 = ssub.s32 %s21, %s28
      %p124 = scmp.eq.s32.totalorder %s123, 0
      %s126 = sadd.s32 %s125, 1
      %s127 = scalar_select %p124, %s125, %s126
      %p130 = pneg %p124
      %p131 = scmp.eq.s32.totalorder %s21, 1
      %p132 = por %p130, %p131
      %p133 = scmp.ne.s32.totalorder %s125, %s128
      %p134 = scmp.eq.s32.totalorder %s21, 0
      %p135 = por %p133, %p134
      %p136 = scmp.ne.s32.totalorder %s125, %s128
      %p137 = scmp.eq.s32.totalorder %s26, 1
      %p138 = por %p136, %p137
      %p139 = scmp.ne.s32.totalorder %s128, %s129
      %p140 = scmp.eq.s32.totalorder %s26, 0
      %p141 = por %p139, %p140
      %p142 = scmp.ne.s32.totalorder %s128, %s129
      %p143 = scmp.eq.s32.totalorder %s27, 1
      %p144 = por %p142, %p143
      %p146 = scmp.ne.s32.totalorder %s129, %s145
      %p147 = scmp.eq.s32.totalorder %s27, 0
      %p148 = por %p146, %p147
      %p149 = scmp.le.s32.totalorder 1, %s21
      %p150 = scmp.lt.s32.totalorder %s21, 3
      %p151 = pnand %p149, %p150
      %p152 = pneg %p151
      // Predicated region
      $region9: #{tpu_custom_call.1} parent=5 // pred_check
        _
      $region10: #{tpu_custom_call.1} parent=5 // pred_check_branch
        %154 = sbr.rel (%p151) target = $region12
      $region11: #{tpu_custom_call.1} parent=5 // pred_region
        %s155 = ssub.s32 %s21, 1
        // Predicated region
        $region13: #{tpu_custom_call.1} parent=11 // pred_check
          %p156 = pneg %p68
        $region14: #{tpu_custom_call.1} parent=11 // pred_check_branch
          %158 = sbr.rel (%p156) target = $region16
        $region15: #{tpu_custom_call.1} parent=11 // pred_region
          %s160 = ssub.s32 768, 768
          %161 = vsyncadd [#allocation6], %s160
          %s162 = sshll.u32 [#allocation5], 4
          %s163 = int_to_ptr.vmem [resolvable:$true] %s162
          %168 = dma.hbm_to_vmem [thread:$0]  %s1, 768, %s163, [#allocation6], 64, 64, 4
        $region16: #{tpu_custom_call.1} parent=11 // pred_fallthru
          _
        // Predicated region
        $region17: #{tpu_custom_call.1} parent=11 // pred_check
          %p169 = pneg %p89
        $region18: #{tpu_custom_call.1} parent=11 // pred_check_branch
          %171 = sbr.rel (%p169) target = $region20
        $region19: #{tpu_custom_call.1} parent=11 // pred_region
          %s173 = ssub.s32 48, 48
          %174 = vsyncadd [#allocation6], %s173
          %s175 = sshll.u32 [#allocation7], 4
          %s176 = int_to_ptr.vmem [resolvable:$true] %s175
          %181 = dma.hbm_to_vmem [thread:$0]  %s2, 48, %s176, [#allocation6], 16, 16, 1
        $region20: #{tpu_custom_call.1} parent=11 // pred_fallthru
          _
      $region12: #{tpu_custom_call.1} parent=5 // pred_fallthru
        _
      %p182 = scmp.lt.s32.totalorder %s21, 2
      // Predicated region
      $region21: #{tpu_custom_call.1} parent=5 // pred_check
        %p183 = pneg %p182
      $region22: #{tpu_custom_call.1} parent=5 // pred_check_branch
        %185 = sbr.rel (%p183) target = $region24
      $region23: #{tpu_custom_call.1} parent=5 // pred_region
        // Predicated region
        $region25: #{tpu_custom_call.1} parent=23 // pred_check
          %p186 = pneg %p41
        $region26: #{tpu_custom_call.1} parent=23 // pred_check_branch
          %188 = sbr.rel (%p186) target = $region28
        $region27: #{tpu_custom_call.1} parent=23 // pred_region
          %s189 = sand.u32 %s31, 1
          %s190 = scalar_lea.sflag [#allocation3], %s189
          %s191 = sand.u32 %s31, 1
          %s192 = smul.addr %s191, 8
          %s193 = scalar_lea.vmem [#allocation2], %s192
          %s195 = ssub.s32 128, 128
          %196 = vsyncadd %s190, %s195
          %s197 = smul.addr %s21, 128
          %s198 = scalar_lea.hbm %s0, %s197
          %s200 = sshll.u32 %s193, 4
          %s201 = int_to_ptr.vmem [resolvable:$true] %s200
          %203 = dma.hbm_to_vmem [thread:$0]  %s198, 128, %s201, %s190
        $region28: #{tpu_custom_call.1} parent=23 // pred_fallthru
          _
      $region24: #{tpu_custom_call.1} parent=5 // pred_fallthru
        _
      %p204 = scmp.le.s32.totalorder 1, %s21
      %p205 = scmp.lt.s32.totalorder %s21, 3
      %p206 = pnand %p204, %p205
      %p207 = pneg %p206
      // Predicated region
      $region29: #{tpu_custom_call.1} parent=5 // pred_check
        _
      $region30: #{tpu_custom_call.1} parent=5 // pred_check_branch
        %209 = sbr.rel (%p206) target = $region32
      $region31: #{tpu_custom_call.1} parent=5 // pred_region
        %s210 = ssub.s32 %s21, 1
        %s211 = sand.u32 %s34, 1
        %s212 = scalar_lea.sflag [#allocation3], %s211
        %s213 = sand.u32 %s34, 1
        %s214 = smul.addr %s213, 8
        %s215 = scalar_lea.vmem [#allocation2], %s214
        // Predicated region
        $region33: #{tpu_custom_call.1} parent=31 // pred_check
          %p216 = pneg %p47
        $region34: #{tpu_custom_call.1} parent=31 // pred_check_branch
          %218 = sbr.rel (%p216) target = $region36
        $region35: #{tpu_custom_call.1} parent=31 // pred_region
          %219 = dma.done %s212, 128
        $region36: #{tpu_custom_call.1} parent=31 // pred_fallthru
          _
        // Predicated region
        $region37: #{tpu_custom_call.1} parent=31 // pred_check
          %p220 = pneg %p68
        $region38: #{tpu_custom_call.1} parent=31 // pred_check_branch
          %222 = sbr.rel (%p220) target = $region40
        $region39: #{tpu_custom_call.1} parent=31 // pred_region
          %223 = dma.done [#allocation6], 768
        $region40: #{tpu_custom_call.1} parent=31 // pred_fallthru
          _
        // Predicated region
        $region41: #{tpu_custom_call.1} parent=31 // pred_check
          %p224 = pneg %p89
        $region42: #{tpu_custom_call.1} parent=31 // pred_check_branch
          %226 = sbr.rel (%p224) target = $region44
        $region43: #{tpu_custom_call.1} parent=31 // pred_region
          %227 = dma.done [#allocation6], 48
        $region44: #{tpu_custom_call.1} parent=31 // pred_fallthru
          _
        %s228 = sand.u32 %s34, 1
        %s229 = scalar_lea.sflag [#allocation3], %s228
        %s230 = sand.u32 %s34, 1
        %s231 = smul.addr %s230, 8
        %s232 = scalar_lea.vmem [#allocation2], %s231
        %p233 = pneg %p47
        %p234 = pneg %p44
        %p235 = pneg %p68
        %p236 = pneg %p65
        %p237 = pneg %p89
        %p238 = pneg %p86
        %p239 = pneg %p115
        %p240 = pneg %p112
        %s241 = sand.u32 %s102, 1
        %s242 = scalar_lea.sflag [#allocation4], %s241
        %s243 = sand.u32 %s102, 1
        %s244 = smul.addr %s243, 8
        %s245 = scalar_lea.vmem [#allocation8], %s244
        %p246 = pneg %p141
        %p247 = pneg %p138
        %s248 = sand.u32 %s128, 1
        %s249 = scalar_lea.sflag [#allocation10], %s248
        %s250 = sand.u32 %s128, 1
        %s251 = smul.addr %s250, 8
        %s252 = scalar_lea.vmem [#allocation9], %s251
        %v254 = vld [vmem:[%s215] sm:$0xff]
        %v255 = vpack.c.bf16 %v254, %v254
        %v256 = vld [vmem:[#allocation5] sm:$0xf]
        %v257 = vld [vmem:[#allocation5 + $0x4] sm:$0xf]
        %v258 = vld [vmem:[#allocation5 + $0x8] sm:$0xf]
        %v259 = vld [vmem:[#allocation5 + $0xc] sm:$0xf]
        %v260 = vld [vmem:[#allocation7] sm:$0x1]
        %v262 = vlaneseq
        %v263 = vshrl.u32 %v262, 7
        %v264 = vsub.s32 0, %v263
        %v265 = vrot.slane %v260, %v264
        %v271 = vunpack.c.l.b16 %v256
        %v272 = vunpack.c.l.b16 %v257
        %v273 = vunpack.c.l.b16 %v258
        %v274 = vunpack.c.l.b16 %v259
        %v275 = vpack.c.b16 %v272, %v271
        %v276 = vpack.c.b16 %v274, %v273
        %vm279 = vcmask 261120
        %v281 = vsel %vm279, %v255, 0
        %283 = vmatprep.subr.bf16.mxu0 0
        %284 = vmatpush1.bf16.msra.mxu0 %v275
        %285 = vmatprep.subr.bf16.mxu0 0
        %286 = vmatpush1.bf16.msra.mxu0 %v276
        %287 = vmatprep.subr.bf16.mxu0 0
        %288 = vmatpush1.bf16.msra.mxu0 0
        %289 = vmatprep.subr.bf16.mxu0 0
        %290 = vmatpush1.bf16.msra.mxu0 0
        %291 = vmatprep.subr.bf16.mxu0 0
        %292 = vmatpush1.bf16.msra.mxu0 0
        %293 = vmatprep.subr.bf16.mxu0 0
        %294 = vmatpush1.bf16.msra.mxu0 0
        %295 = vmatprep.subr.bf16.mxu0 0
        %296 = vmatpush1.bf16.msra.mxu0 0
        %297 = vmatprep.subr.bf16.mxu0 0
        %298 = vmatpush1.bf16.msra.mxu0 0
        %299 = vmatprep.subr.bf16.mxu0 0
        %300 = vmatpush1.bf16.msra.mxu0 0
        %301 = vmatprep.subr.bf16.mxu0 0
        %302 = vmatpush1.bf16.msra.mxu0 0
        %303 = vmatprep.subr.bf16.mxu0 0
        %304 = vmatpush1.bf16.msra.mxu0 0
        %305 = vmatprep.subr.bf16.mxu0 0
        %306 = vmatpush1.bf16.msra.mxu0 0
        %307 = vmatprep.subr.bf16.mxu0 0
        %308 = vmatpush1.bf16.msra.mxu0 0
        %309 = vmatprep.subr.bf16.mxu0 0
        %310 = vmatpush1.bf16.msra.mxu0 0
        %311 = vmatprep.subr.bf16.mxu0 0
        %312 = vmatpush1.bf16.msra.mxu0 0
        %313 = vmatprep.subr.bf16.mxu0 0
        %314 = vmatpush1.bf16.msra.mxu0 0
        %315 = vmatprep.mubr.bf16.mxu0 0
        %316 = vmatmul.mubr.bf16.gmra.mrb[0].mxu0 %v281
        %v317 = vpop.f32.mrb[0].mxu0
        %v318 = vadd.f32 %v265, %v317
        %v319 = vpop.f32.mrb[0].mxu0
        %v320 = vpop.f32.mrb[0].mxu0
        %v321 = vpop.f32.mrb[0].mxu0
        %322 = vdwg.mxu0
        %s323 = scalar_lea.vmem [#allocation5], 16
        %v324 = vld [vmem:[%s323] sm:$0xf]
        %v325 = vld [vmem:[%s323 + $0x4] sm:$0xf]
        %v326 = vld [vmem:[%s323 + $0x8] sm:$0xf]
        %v327 = vld [vmem:[%s323 + $0xc] sm:$0xf]
        %s328 = scalar_lea.vmem [#allocation7], 1
        %v329 = vld [vmem:[%s328] sm:$0x1]
        %v331 = vlaneseq
        %v332 = vshrl.u32 %v331, 7
        %v333 = vsub.s32 0, %v332
        %v334 = vrot.slane %v329, %v333
        %v340 = vunpack.c.l.b16 %v324
        %v341 = vunpack.c.l.b16 %v325
        %v342 = vunpack.c.l.b16 %v326
        %v343 = vunpack.c.l.b16 %v327
        %v344 = vpack.c.b16 %v341, %v340
        %v345 = vpack.c.b16 %v343, %v342
        %348 = vmatprep.subr.bf16.mxu0 0
        %349 = vmatpush1.bf16.msra.mxu0 %v344
        %350 = vmatprep.subr.bf16.mxu0 0
        %351 = vmatpush1.bf16.msra.mxu0 %v345
        %352 = vmatprep.subr.bf16.mxu0 0
        %353 = vmatpush1.bf16.msra.mxu0 0
        %354 = vmatprep.subr.bf16.mxu0 0
        %355 = vmatpush1.bf16.msra.mxu0 0
        %356 = vmatprep.subr.bf16.mxu0 0
        %357 = vmatpush1.bf16.msra.mxu0 0
        %358 = vmatprep.subr.bf16.mxu0 0
        %359 = vmatpush1.bf16.msra.mxu0 0
        %360 = vmatprep.subr.bf16.mxu0 0
        %361 = vmatpush1.bf16.msra.mxu0 0
        %362 = vmatprep.subr.bf16.mxu0 0
        %363 = vmatpush1.bf16.msra.mxu0 0
        %364 = vmatprep.subr.bf16.mxu0 0
        %365 = vmatpush1.bf16.msra.mxu0 0
        %366 = vmatprep.subr.bf16.mxu0 0
        %367 = vmatpush1.bf16.msra.mxu0 0
        %368 = vmatprep.subr.bf16.mxu0 0
        %369 = vmatpush1.bf16.msra.mxu0 0
        %370 = vmatprep.subr.bf16.mxu0 0
        %371 = vmatpush1.bf16.msra.mxu0 0
        %372 = vmatprep.subr.bf16.mxu0 0
        %373 = vmatpush1.bf16.msra.mxu0 0
        %374 = vmatprep.subr.bf16.mxu0 0
        %375 = vmatpush1.bf16.msra.mxu0 0
        %376 = vmatprep.subr.bf16.mxu0 0
        %377 = vmatpush1.bf16.msra.mxu0 0
        %378 = vmatprep.subr.bf16.mxu0 0
        %379 = vmatpush1.bf16.msra.mxu0 0
        %380 = vmatprep.mubr.bf16.mxu0 0
        %381 = vmatmul.mubr.bf16.gmra.mrb[0].mxu0 %v281
        %v382 = vpop.f32.mrb[0].mxu0
        %v383 = vadd.f32 %v334, %v382
        %v384 = vpop.f32.mrb[0].mxu0
        %v385 = vpop.f32.mrb[0].mxu0
        %v386 = vpop.f32.mrb[0].mxu0
        %387 = vdwg.mxu0
        %s388 = scalar_lea.vmem [#allocation5], 32
        %v389 = vld [vmem:[%s388] sm:$0xf]
        %v390 = vld [vmem:[%s388 + $0x4] sm:$0xf]
        %v391 = vld [vmem:[%s388 + $0x8] sm:$0xf]
        %v392 = vld [vmem:[%s388 + $0xc] sm:$0xf]
        %s393 = scalar_lea.vmem [#allocation7], 2
        %v394 = vld [vmem:[%s393] sm:$0x1]
        %v396 = vlaneseq
        %v397 = vshrl.u32 %v396, 7
        %v398 = vsub.s32 0, %v397
        %v399 = vrot.slane %v394, %v398
        %v405 = vunpack.c.l.b16 %v389
        %v406 = vunpack.c.l.b16 %v390
        %v407 = vunpack.c.l.b16 %v391
        %v408 = vunpack.c.l.b16 %v392
        %v409 = vpack.c.b16 %v406, %v405
        %v410 = vpack.c.b16 %v408, %v407
        %413 = vmatprep.subr.bf16.mxu0 0
        %414 = vmatpush1.bf16.msra.mxu0 %v409
        %415 = vmatprep.subr.bf16.mxu0 0
        %416 = vmatpush1.bf16.msra.mxu0 %v410
        %417 = vmatprep.subr.bf16.mxu0 0
        %418 = vmatpush1.bf16.msra.mxu0 0
        %419 = vmatprep.subr.bf16.mxu0 0
        %420 = vmatpush1.bf16.msra.mxu0 0
        %421 = vmatprep.subr.bf16.mxu0 0
        %422 = vmatpush1.bf16.msra.mxu0 0
        %423 = vmatprep.subr.bf16.mxu0 0
        %424 = vmatpush1.bf16.msra.mxu0 0
        %425 = vmatprep.subr.bf16.mxu0 0
        %426 = vmatpush1.bf16.msra.mxu0 0
        %427 = vmatprep.subr.bf16.mxu0 0
        %428 = vmatpush1.bf16.msra.mxu0 0
        %429 = vmatprep.subr.bf16.mxu0 0
        %430 = vmatpush1.bf16.msra.mxu0 0
        %431 = vmatprep.subr.bf16.mxu0 0
        %432 = vmatpush1.bf16.msra.mxu0 0
        %433 = vmatprep.subr.bf16.mxu0 0
        %434 = vmatpush1.bf16.msra.mxu0 0
        %435 = vmatprep.subr.bf16.mxu0 0
        %436 = vmatpush1.bf16.msra.mxu0 0
        %437 = vmatprep.subr.bf16.mxu0 0
        %438 = vmatpush1.bf16.msra.mxu0 0
        %439 = vmatprep.subr.bf16.mxu0 0
        %440 = vmatpush1.bf16.msra.mxu0 0
        %441 = vmatprep.subr.bf16.mxu0 0
        %442 = vmatpush1.bf16.msra.mxu0 0
        %443 = vmatprep.subr.bf16.mxu0 0
        %444 = vmatpush1.bf16.msra.mxu0 0
        %445 = vmatprep.mubr.bf16.mxu0 0
        %446 = vmatmul.mubr.bf16.gmra.mrb[0].mxu0 %v281
        %v447 = vpop.f32.mrb[0].mxu0
        %v448 = vadd.f32 %v399, %v447
        %v449 = vpop.f32.mrb[0].mxu0
        %v450 = vpop.f32.mrb[0].mxu0
        %v451 = vpop.f32.mrb[0].mxu0
        %452 = vdwg.mxu0
        %v453 = vpack.c.bf16 %v318, %v318
        %v454 = vpack.c.bf16 %v383, %v383
        %v456 = vsel %vm279, %v453, 0
        %v459 = vsel %vm279, %v454, 0
        %461 = vmatprep.subr.bf16.mxu0 0
        %462 = vmatpush1.bf16.xpose.msra.mxu0 %v459
        %463 = vmatprep.subr.bf16.mxu0 0
        %464 = vmatpush1.bf16.xpose.msra.mxu0 0
        %465 = vmatprep.subr.bf16.mxu0 0
        %466 = vmatpush1.bf16.xpose.msra.mxu0 0
        %467 = vmatprep.subr.bf16.mxu0 0
        %468 = vmatpush1.bf16.xpose.msra.mxu0 0
        %469 = vmatprep.subr.bf16.mxu0 0
        %470 = vmatpush1.bf16.xpose.msra.mxu0 0
        %471 = vmatprep.subr.bf16.mxu0 0
        %472 = vmatpush1.bf16.xpose.msra.mxu0 0
        %473 = vmatprep.subr.bf16.mxu0 0
        %474 = vmatpush1.bf16.xpose.msra.mxu0 0
        %475 = vmatprep.subr.bf16.mxu0 0
        %476 = vmatpush1.bf16.xpose.msra.mxu0 0
        %477 = vmatprep.subr.bf16.mxu0 0
        %478 = vmatpush1.bf16.xpose.msra.mxu0 0
        %479 = vmatprep.subr.bf16.mxu0 0
        %480 = vmatpush1.bf16.xpose.msra.mxu0 0
        %481 = vmatprep.subr.bf16.mxu0 0
        %482 = vmatpush1.bf16.xpose.msra.mxu0 0
        %483 = vmatprep.subr.bf16.mxu0 0
        %484 = vmatpush1.bf16.xpose.msra.mxu0 0
        %485 = vmatprep.subr.bf16.mxu0 0
        %486 = vmatpush1.bf16.xpose.msra.mxu0 0
        %487 = vmatprep.subr.bf16.mxu0 0
        %488 = vmatpush1.bf16.xpose.msra.mxu0 0
        %489 = vmatprep.subr.bf16.mxu0 0
        %490 = vmatpush1.bf16.xpose.msra.mxu0 0
        %491 = vmatprep.subr.bf16.mxu0 0
        %492 = vmatpush1.bf16.xpose.msra.mxu0 0
        %493 = vmatprep.mubr.bf16.mxu0 0
        %494 = vmatmul.mubr.bf16.gmra.mrb[0].mxu0 %v456
        %v495 = vpop.f32.mrb[0].mxu0
        %v496 = vadd.f32 0.0, %v495
        %v497 = vpop.f32.mrb[0].mxu0
        %v498 = vpop.f32.mrb[0].mxu0
        %v499 = vpop.f32.mrb[0].mxu0
        %500 = vdwg.mxu0
        %vm501 = vcmask 64512
        %v502 = vsel %vm501, %v496, -inf
        %503 = vmax.xlane.f32.xlu0 %v502
        %v504 = vpop.xlane.xlu0 %503
        %v505 = vsub.f32 %v496, %v504
        %v506 = vmul.f32 %v505, 1.442695
        %v507 = vpow.pop %v506
        %v508 = vsel %vm501, %v507, 0.0
        %509 = vadd.xlane.f32.xlu0 %v508
        %v510 = vpop.xlane.xlu0 %509
        %v511 = vrcp.pop %v510
        %v512 = vmul.f32 %v507, %v511
        %v513 = vpack.c.bf16 %v512, %v512
        %v514 = vpack.c.bf16 %v448, %v448
        %v516 = vsel %vm501, %v513, 0
        %vm518 = vcmask 1043456
        %v520 = vsel %vm518, %v514, 0
        %522 = vmatprep.subr.bf16.mxu0 0
        %523 = vmatpush1.bf16.msra.mxu0 %v520
        %524 = vmatprep.subr.bf16.mxu0 0
        %525 = vmatpush1.bf16.msra.mxu0 0
        %526 = vmatprep.subr.bf16.mxu0 0
        %527 = vmatpush1.bf16.msra.mxu0 0
        %528 = vmatprep.subr.bf16.mxu0 0
        %529 = vmatpush1.bf16.msra.mxu0 0
        %530 = vmatprep.subr.bf16.mxu0 0
        %531 = vmatpush1.bf16.msra.mxu0 0
        %532 = vmatprep.subr.bf16.mxu0 0
        %533 = vmatpush1.bf16.msra.mxu0 0
        %534 = vmatprep.subr.bf16.mxu0 0
        %535 = vmatpush1.bf16.msra.mxu0 0
        %536 = vmatprep.subr.bf16.mxu0 0
        %537 = vmatpush1.bf16.msra.mxu0 0
        %538 = vmatprep.subr.bf16.mxu0 0
        %539 = vmatpush1.bf16.msra.mxu0 0
        %540 = vmatprep.subr.bf16.mxu0 0
        %541 = vmatpush1.bf16.msra.mxu0 0
        %542 = vmatprep.subr.bf16.mxu0 0
        %543 = vmatpush1.bf16.msra.mxu0 0
        %544 = vmatprep.subr.bf16.mxu0 0
        %545 = vmatpush1.bf16.msra.mxu0 0
        %546 = vmatprep.subr.bf16.mxu0 0
        %547 = vmatpush1.bf16.msra.mxu0 0
        %548 = vmatprep.subr.bf16.mxu0 0
        %549 = vmatpush1.bf16.msra.mxu0 0
        %550 = vmatprep.subr.bf16.mxu0 0
        %551 = vmatpush1.bf16.msra.mxu0 0
        %552 = vmatprep.subr.bf16.mxu0 0
        %553 = vmatpush1.bf16.msra.mxu0 0
        %554 = vmatprep.mubr.bf16.mxu0 0
        %555 = vmatmul.mubr.bf16.gmra.mrb[0].mxu0 %v516
        %v556 = vpop.f32.mrb[0].mxu0
        %v557 = vadd.f32 0.0, %v556
        %v558 = vpop.f32.mrb[0].mxu0
        %v559 = vpop.f32.mrb[0].mxu0
        %v560 = vpop.f32.mrb[0].mxu0
        %561 = vdwg.mxu0
        %562 = vst.msk [vmem:[%s245] sm:$0xff] %vm279, %v557
        %563 = vst.msk [vmem:[%s252] sm:$0xff] %vm501, %v512
        %s564 = sand.u32 %s102, 1
        %s565 = scalar_lea.sflag [#allocation4], %s564
        %s566 = sand.u32 %s102, 1
        %s567 = smul.addr %s566, 8
        %s568 = scalar_lea.vmem [#allocation8], %s567
        %s569 = sand.u32 %s128, 1
        %s570 = scalar_lea.sflag [#allocation10], %s569
        %s571 = sand.u32 %s128, 1
        %s572 = smul.addr %s571, 8
        %s573 = scalar_lea.vmem [#allocation9], %s572
        // Predicated region
        $region45: #{tpu_custom_call.1} parent=31 // pred_check
          %p574 = pneg %p112
        $region46: #{tpu_custom_call.1} parent=31 // pred_check_branch
          %576 = sbr.rel (%p574) target = $region48
        $region47: #{tpu_custom_call.1} parent=31 // pred_region
          %s578 = ssub.s32 128, 128
          %579 = vsyncadd %s565, %s578
          %s580 = smul.addr %s26, 128
          %s581 = scalar_lea.hbm %s3, %s580
          %s583 = sshll.u32 %s568, 4
          %s584 = int_to_ptr.vmem [resolvable:$true] %s583
          %586 = dma.vmem_to_hbm [thread:$0]  %s584, 128, %s581, %s565
        $region48: #{tpu_custom_call.1} parent=31 // pred_fallthru
          _
        // Predicated region
        $region49: #{tpu_custom_call.1} parent=31 // pred_check
          %p587 = pneg %p138
        $region50: #{tpu_custom_call.1} parent=31 // pred_check_branch
          %589 = sbr.rel (%p587) target = $region52
        $region51: #{tpu_custom_call.1} parent=31 // pred_region
          %s591 = ssub.s32 128, 128
          %592 = vsyncadd %s570, %s591
          %s593 = smul.addr %s26, 128
          %s594 = scalar_lea.hbm %s4, %s593
          %s596 = sshll.u32 %s573, 4
          %s597 = int_to_ptr.vmem [resolvable:$true] %s596
          %599 = dma.vmem_to_hbm [thread:$0]  %s597, 128, %s594, %s570
        $region52: #{tpu_custom_call.1} parent=31 // pred_fallthru
          _
      $region32: #{tpu_custom_call.1} parent=5 // pred_fallthru
        _
      %p600 = scmp.le.s32.totalorder 2, %s21
      // Predicated region
      $region53: #{tpu_custom_call.1} parent=5 // pred_check
        %p601 = pneg %p600
      $region54: #{tpu_custom_call.1} parent=5 // pred_check_branch
        %603 = sbr.rel (%p601) target = $region56
      $region55: #{tpu_custom_call.1} parent=5 // pred_region
        %s604 = ssub.s32 %s21, 2
        // Predicated region
        $region57: #{tpu_custom_call.1} parent=55 // pred_check
          %p605 = pneg %p118
        $region58: #{tpu_custom_call.1} parent=55 // pred_check_branch
          %607 = sbr.rel (%p605) target = $region60
        $region59: #{tpu_custom_call.1} parent=55 // pred_region
          %s608 = sand.u32 %s103, 1
          %s609 = scalar_lea.sflag [#allocation4], %s608
          %s610 = sand.u32 %s103, 1
          %s611 = smul.addr %s610, 8
          %s612 = scalar_lea.vmem [#allocation8], %s611
          %613 = dma.done %s609, 128
        $region60: #{tpu_custom_call.1} parent=55 // pred_fallthru
          _
        // Predicated region
        $region61: #{tpu_custom_call.1} parent=55 // pred_check
          %p614 = pneg %p144
        $region62: #{tpu_custom_call.1} parent=55 // pred_check_branch
          %616 = sbr.rel (%p614) target = $region64
        $region63: #{tpu_custom_call.1} parent=55 // pred_region
          %s617 = sand.u32 %s129, 1
          %s618 = scalar_lea.sflag [#allocation10], %s617
          %s619 = sand.u32 %s129, 1
          %s620 = smul.addr %s619, 8
          %s621 = scalar_lea.vmem [#allocation9], %s620
          %622 = dma.done %s618, 128
        $region64: #{tpu_custom_call.1} parent=55 // pred_fallthru
          _
      $region56: #{tpu_custom_call.1} parent=5 // pred_fallthru
        _
    $region6: #{tpu_custom_call.1} parent=1 // loop_footer
      %s25 = sadd.s32 1, %s21
    $region7: #{tpu_custom_call.1} parent=1 // loop_footer_branch
      %20 = sbr.rel target = $region3
    $region8: #{tpu_custom_call.1} parent=1 // loop_exit
      _
    %623 = vsyncpa [#allocation3], 1
    %s624 = scalar_lea.sflag [#allocation3], 1
    %625 = vsyncpa %s624, 1
    %626 = vsyncpa [#allocation6], 1
    %627 = vsyncpa [#allocation4], 1
    %s628 = scalar_lea.sflag [#allocation4], 1
    %629 = vsyncpa %s628, 1
    %630 = vsyncpa [#allocation10], 1
    %s631 = scalar_lea.sflag [#allocation10], 1
    %632 = vsyncpa %s631, 1

</llo_original>
